<compile_context>
chip_gen: v7x
topology: tpu7x:2x2x1
jax: 0.10.0
libtpu: 0.0.40
codegen_flags: <defaults>
</compile_context>

<pallas_src>
import functools

import jax
import jax.numpy as jnp
import numpy as np
from jax import lax
from jax.experimental import pallas as pl
from jax.experimental.pallas import tpu as pltpu

LEAKY_SLOPE = 0.01          # torch.nn.LeakyReLU default negative_slope
BN_EPS = 1e-5               # torch.nn.BatchNorm2d default eps
MATMUL_DTYPE = jnp.bfloat16  # MXU-native operand dtype (f32 accumulation)


def _leaky(t):
    # valid for 0 < slope < 1: max(t, s*t) == leaky_relu(t)
    return jnp.maximum(t, LEAKY_SLOPE * t)


# ----------------------------------------------------------------------------
# RouteBlock: channel concatenation of two stored feature maps (NCHW, dim 1).
# ----------------------------------------------------------------------------
def route_concat_kernel(a_ref, b_ref, o_ref):
    ca = a_ref.shape[1]
    o_ref[:, :ca] = a_ref[...]
    o_ref[:, ca:] = b_ref[...]


def route_block(outputs, start, end=None):
    """RouteBlock.forward.

    The original PyTorch code indexes `outputs[i + start]` with an undefined `i`;
    we implement the evident intent: select one stored map, or concatenate two
    stored maps along channels.
    # TODO(synk): the undefined `i`/`end` in the reference forward is resolved as
    # direct indices into `outputs`.
    """
    if end is None:
        return outputs[start]          # pure pass-through, no compute to kernel-ize
    a, b = outputs[start], outputs[end]
    n, ca, h, w = a.shape
    cb = b.shape[1]
    return pl.pallas_call(
        route_concat_kernel,
        out_shape=jax.ShapeDtypeStruct((n, ca + cb, h, w), a.dtype),
        in_specs=[pl.BlockSpec(memory_space=pltpu.MemorySpace.VMEM)] * 2,
        out_specs=pl.BlockSpec(memory_space=pltpu.MemorySpace.VMEM),
    )(a, b)


# ----------------------------------------------------------------------------
# Fused ResidualBlockSeries kernel (grid over block index, lane-dense layout).
# ----------------------------------------------------------------------------
def residual_series_kernel(x_ref, mask_ref, w1_ref, g1_ref, b1_ref,
                           w2_ref, g2_ref, b2_ref, o_ref, *, h, w):
    blk = pl.program_id(0)

    # Block 0 seeds the VMEM-resident activation from the input; afterwards the
    # activation lives in o_ref across the whole (sequential) block axis.
    @pl.when(blk == 0)
    def _():
        o_ref[...] = x_ref[...]

    x = o_ref[...]                                   # (Cin, NHW) f32, lane-dense
    nhw = x.shape[1]
    inv_nhw = 1.0 / nhw

    # ---- conv1 (1x1): (C1, Cin) @ (Cin, NHW), bf16 operands, f32 accumulate ----
    out1 = jnp.dot(w1_ref[0].astype(MATMUL_DTYPE), x.astype(MATMUL_DTYPE),
                   preferred_element_type=jnp.float32)          # (C1, NHW)

    # ---- bn1: single-pass batch stats (biased variance), folded affine ----
    s1 = jnp.sum(out1, axis=1, keepdims=True)
    q1 = jnp.sum(out1 * out1, axis=1, keepdims=True)
    m1 = s1 * inv_nhw
    v1 = q1 * inv_nhw - m1 * m1
    sc1 = g1_ref[0] * lax.rsqrt(v1 + BN_EPS)                    # (C1, 1)
    out1 = out1 * sc1 + (b1_ref[0] - m1 * sc1)

    # ---- conv2 (3x3, stride 1, pad 1): 9 lane-rolled + edge-masked taps,
    #      one K = 9*C1 contraction on the MXU ----
    taps = []
    k = 0
    for dh in (-1, 0, 1):
        for dw in (-1, 0, 1):
            off = dh * w + dw
            t = out1 if off == 0 else pltpu.roll(out1, shift=(-off) % nhw, axis=1)
            if dh == 0 and dw == 0:
                taps.append(t)                       # interior tap: mask is all-ones
            else:
                taps.append(t * mask_ref[k:k + 1, :])
            k += 1
    patches = jnp.concatenate(taps, axis=0).astype(MATMUL_DTYPE)   # (9*C1, NHW)
    out2 = jnp.dot(w2_ref[0].astype(MATMUL_DTYPE), patches,
                   preferred_element_type=jnp.float32)              # (C2, NHW)

    # ---- bn2 ----
    s2 = jnp.sum(out2, axis=1, keepdims=True)
    q2 = jnp.sum(out2 * out2, axis=1, keepdims=True)
    m2 = s2 * inv_nhw
    v2 = q2 * inv_nhw - m2 * m2
    sc2 = g2_ref[0] * lax.rsqrt(v2 + BN_EPS)
    out2 = out2 * sc2 + (b2_ref[0] - m2 * sc2)

    # ---- leaky(out) + leaky(residual); full-lane (512-wide) store ----
    o_ref[...] = _leaky(out2) + _leaky(x)


def _make_tap_masks(n, h, w):
    """(9, N*H*W) f32 validity masks for the 3x3 taps (zero-padding semantics)."""
    h_idx = jnp.arange(h).reshape(h, 1)
    w_idx = jnp.arange(w).reshape(1, w)
    masks = []
    for dh in (-1, 0, 1):
        for dw in (-1, 0, 1):
            m = ((h_idx + dh >= 0) & (h_idx + dh < h) &
                 (w_idx + dw >= 0) & (w_idx + dw < w))      # (H, W)
            masks.append(jnp.tile(m.reshape(-1), n))        # (N*H*W,)
    return jnp.stack(masks).astype(jnp.float32)


@jax.jit
def residual_block_series(x_nchw, params_list):
    """NCHW in / NCHW out; chains len(params_list) residual blocks in one pallas_call."""
    if len(params_list) == 0:
        return x_nchw
    N, Cin, H, W = x_nchw.shape
    n_blocks = len(params_list)

    # Stack per-block params with a leading block axis (streamed by the grid).
    w1 = jnp.stack([p[0] for p in params_list])                               # (B, C1, Cin)
    g1 = jnp.stack([p[1] for p in params_list])                               # (B, C1, 1)
    b1 = jnp.stack([p[2] for p in params_list])                               # (B, C1, 1)
    w2 = jnp.stack([p[3].reshape(p[3].shape[0], -1) for p in params_list])    # (B, C2, 9*C1)
    g2 = jnp.stack([p[4] for p in params_list])                               # (B, C2, 1)
    b2 = jnp.stack([p[5] for p in params_list])                               # (B, C2, 1)
    C1 = w1.shape[1]
    C2 = w2.shape[1]
    assert C2 == Cin, "residual add requires outfilters2 == infilters"

    NHW = N * H * W
    # NCHW -> channel-first flat (C, N*H*W): spatial maps to the 128-wide lanes.
    x_cf = jnp.transpose(x_nchw, (1, 0, 2, 3)).reshape(Cin, NHW).astype(jnp.float32)
    masks = _make_tap_masks(N, H, W)

    kernel = functools.partial(residual_series_kernel, h=H, w=W)
    out_cf = pl.pallas_call(
        kernel,
        out_shape=jax.ShapeDtypeStruct((C2, NHW), jnp.float32),
        grid_spec=pltpu.PrefetchScalarGridSpec(
            num_scalar_prefetch=0,
            grid=(n_blocks,),
            in_specs=[
                pl.BlockSpec((Cin, NHW), lambda b: (0, 0)),          # x (used at block 0)
                pl.BlockSpec((9, NHW), lambda b: (0, 0)),            # 3x3 edge masks
                pl.BlockSpec((1, C1, Cin), lambda b: (b, 0, 0)),     # conv1 weight
                pl.BlockSpec((1, C1, 1), lambda b: (b, 0, 0)),       # bn1 gamma
                pl.BlockSpec((1, C1, 1), lambda b: (b, 0, 0)),       # bn1 beta
                pl.BlockSpec((1, C2, 9 * C1), lambda b: (b, 0, 0)),  # conv2 weight (im2col layout)
                pl.BlockSpec((1, C2, 1), lambda b: (b, 0, 0)),       # bn2 gamma
                pl.BlockSpec((1, C2, 1), lambda b: (b, 0, 0)),       # bn2 beta
            ],
            # Same block index every step -> activation stays VMEM-resident.
            out_specs=pl.BlockSpec((C2, NHW), lambda b: (0, 0)),
        ),
        compiler_params=pltpu.CompilerParams(
            dimension_semantics=("arbitrary",),      # sequential dependence across blocks
            vmem_limit_bytes=32 * 1024 * 1024,
        ),
    )(x_cf, masks, w1, g1, b1, w2, g2, b2)

    return jnp.transpose(out_cf.reshape(C2, N, H, W), (1, 0, 2, 3))


# ----------------------------------------------------------------------------
# Parameters + pure-JAX references
# ----------------------------------------------------------------------------
def init_params(key, n_blocks, infilters, outfilters1, outfilters2):
    """Deterministic synthetic parameters; conv weights stored (out, ..., in)."""
    params = []
    for _ in range(n_blocks):
        key, k1, k2, k3, k4, k5, k6 = jax.random.split(key, 7)
        w1 = 0.2 * jax.random.normal(k1, (outfilters1, infilters), jnp.float32)
        g1 = 1.0 + 0.1 * jax.random.normal(k2, (outfilters1, 1), jnp.float32)
        b1 = 0.1 * jax.random.normal(k3, (outfilters1, 1), jnp.float32)
        w2 = 0.1 * jax.random.normal(k4, (outfilters2, 3, 3, outfilters1), jnp.float32)
        g2 = 1.0 + 0.1 * jax.random.normal(k5, (outfilters2, 1), jnp.float32)
        b2 = 0.1 * jax.random.normal(k6, (outfilters2, 1), jnp.float32)
        params.append((w1, g1, b1, w2, g2, b2))
    return params


def ref_series(x_nchw, params_list, bf16_matmul=False):
    """Pure-JAX reference mirroring the PyTorch forward.

    bf16_matmul=True applies the same bf16 quantization to the conv operands as
    the kernel (f32 accumulation), for a tight structural comparison.
    """
    cast = (lambda t: t.astype(jnp.bfloat16)) if bf16_matmul else (lambda t: t)
    x = jnp.transpose(x_nchw, (0, 2, 3, 1)).astype(jnp.float32)   # NHWC
    for (w1, g1, b1, w2, g2, b2) in params_list:
        out = jnp.einsum('nhwc,dc->nhwd', cast(x), cast(w1),
                         preferred_element_type=jnp.float32)
        m = out.mean((0, 1, 2)); v = ((out - m) ** 2).mean((0, 1, 2))
        out = (out - m) / jnp.sqrt(v + BN_EPS) * g1[:, 0] + b1[:, 0]
        hwio = jnp.transpose(w2, (1, 2, 3, 0))                    # (3, 3, C1, C2)
        out = lax.conv_general_dilated(cast(out), cast(hwio), (1, 1), 'SAME',
                                       dimension_numbers=('NHWC', 'HWIO', 'NHWC'),
                                       preferred_element_type=jnp.float32)
        m = out.mean((0, 1, 2)); v = ((out - m) ** 2).mean((0, 1, 2))
        out = (out - m) / jnp.sqrt(v + BN_EPS) * g2[:, 0] + b2[:, 0]
        x = _leaky(out) + _leaky(x)
    return jnp.transpose(x, (0, 3, 1, 2))


if __name__ == "__main__":
    key = jax.random.PRNGKey(0)
    kx, kp, kr = jax.random.split(key, 3)

    # Small shapes consistent with the module: batch=2, channels=4, spatial=16,
    # 2 residual blocks with bottleneck width 8 (outfilters2 == infilters).
    N, Cin, H, W = 2, 4, 16, 16
    n_blocks, C1 = 2, 8
    C2 = Cin

    x = jax.random.normal(kx, (N, Cin, H, W), jnp.float32)        # NCHW
    params = init_params(kp, n_blocks, Cin, C1, C2)

    out = jax.block_until_ready(residual_block_series(x, params))

    # Strict check: reference with the same bf16-MXU quantization as the kernel.
    ref_bf16 = ref_series(x, params, bf16_matmul=True)
    np.testing.assert_allclose(np.asarray(out), np.asarray(ref_bf16),
                               rtol=5e-3, atol=5e-3)
    # Sanity check vs full-f32 math; the (small) gap is the intended bf16 MXU
    # operand quantization, already bounded tightly by the check above.
    ref_f32 = ref_series(x, params, bf16_matmul=False)
    np.testing.assert_allclose(np.asarray(out), np.asarray(ref_f32),
                               rtol=5e-2, atol=1e-1)

    # RouteBlock: concat branch and pass-through branch.
    fmap2 = jax.random.normal(kr, (N, Cin, H, W), jnp.float32)
    outputs = [x, fmap2]
    routed = jax.block_until_ready(route_block(outputs, start=0, end=1))
    np.testing.assert_allclose(np.asarray(routed),
                               np.asarray(jnp.concatenate([x, fmap2], axis=1)),
                               rtol=0, atol=0)
    assert route_block(outputs, start=1) is fmap2

    print("KERNEL_OK")
</pallas_src>

<mosaic_0001>
module attributes {stable_mosaic.version = 11 : i64} {
  func.func @residual_series_kernel(%arg0: i32, %arg1: memref<4x512xf32, #tpu.memory_space<vmem>>, %arg2: memref<9x512xf32, #tpu.memory_space<vmem>>, %arg3: memref<1x8x4xf32, #tpu.memory_space<vmem>>, %arg4: memref<1x8x1xf32, #tpu.memory_space<vmem>>, %arg5: memref<1x8x1xf32, #tpu.memory_space<vmem>>, %arg6: memref<1x4x72xf32, #tpu.memory_space<vmem>>, %arg7: memref<1x4x1xf32, #tpu.memory_space<vmem>>, %arg8: memref<1x4x1xf32, #tpu.memory_space<vmem>>, %arg9: memref<4x512xf32, #tpu.memory_space<vmem>>) attributes {dimension_semantics = [#tpu.dimension_semantics<arbitrary>], iteration_bounds = array<i64: 2>, scalar_prefetch = 0 : i64, scratch_operands = 0 : i64, tpu.core_type = #tpu.core_type<tc>, window_params = [{pipeline_mode = #tpu.pipeline_mode<synchronous>, transform_indices = @transform_0, window_bounds = array<i64: 4, 512>}, {pipeline_mode = #tpu.pipeline_mode<synchronous>, transform_indices = @transform_1, window_bounds = array<i64: 9, 512>}, {transform_indices = @transform_2, window_bounds = array<i64: 1, 8, 4>}, {transform_indices = @transform_3, window_bounds = array<i64: 1, 8, 1>}, {transform_indices = @transform_4, window_bounds = array<i64: 1, 8, 1>}, {transform_indices = @transform_5, window_bounds = array<i64: 1, 4, 72>}, {transform_indices = @transform_6, window_bounds = array<i64: 1, 4, 1>}, {transform_indices = @transform_7, window_bounds = array<i64: 1, 4, 1>}, {pipeline_mode = #tpu.pipeline_mode<synchronous>, transform_indices = @transform_8, window_bounds = array<i64: 4, 512>}]} {
    %c0_i32 = arith.constant 0 : i32
    %0 = arith.cmpi eq, %arg0, %c0_i32 : i32
    %1 = arith.extui %0 : i1 to i32
    %c0_i32_0 = arith.constant 0 : i32
    %2 = arith.cmpi ne, %1, %c0_i32_0 : i32
    scf.if %2 {
      %c0_44 = arith.constant 0 : index
      %c0_45 = arith.constant 0 : index
      %105 = vector.load %arg1[%c0_44, %c0_45] : memref<4x512xf32, #tpu.memory_space<vmem>>, vector<4x512xf32>
      %c0_46 = arith.constant 0 : index
      %c0_47 = arith.constant 0 : index
      %106 = vector.load %arg9[%c0_46, %c0_47] : memref<4x512xf32, #tpu.memory_space<vmem>>, vector<4x512xf32>
      tpu.vector_store %arg9[%c0_46, %c0_47], %105 {strides = array<i32>} : memref<4x512xf32, #tpu.memory_space<vmem>>, vector<4x512xf32>,
    } else {
    }
    %c0 = arith.constant 0 : index
    %c0_1 = arith.constant 0 : index
    %3 = vector.load %arg9[%c0, %c0_1] : memref<4x512xf32, #tpu.memory_space<vmem>>, vector<4x512xf32>
    %c0_2 = arith.constant 0 : index
    %c0_3 = arith.constant 0 : index
    %c0_4 = arith.constant 0 : index
    %4 = vector.load %arg3[%c0_2, %c0_3, %c0_4] : memref<1x8x4xf32, #tpu.memory_space<vmem>>, vector<1x8x4xf32>
    %5 = vector.shape_cast %4 : vector<1x8x4xf32> to vector<8x4xf32>
    %6 = arith.truncf %5 : vector<8x4xf32> to vector<8x4xbf16>
    %7 = arith.truncf %3 : vector<4x512xf32> to vector<4x512xbf16>
    %cst = arith.constant dense<0.000000e+00> : vector<8x512xf32>
    %8 = tpu.matmul %6, %7, %cst {dimension_numbers = #tpu.dot_dimension_numbers<[1], [0], [0], [1], [0, 0, 1, 1], [], []>} : vector<8x4xbf16>, vector<4x512xbf16>, vector<8x512xf32> -> vector<8x512xf32>
    %cst_5 = arith.constant dense<0.000000e+00> : vector<8xf32>
    %9 = vector.multi_reduction <add>, %8, %cst_5 [1] : vector<8x512xf32> to vector<8xf32>
    %10 = vector.shape_cast %9 : vector<8xf32> to vector<8x1xf32>
    %11 = arith.mulf %8, %8 : vector<8x512xf32>
    %cst_6 = arith.constant dense<0.000000e+00> : vector<8xf32>
    %12 = vector.multi_reduction <add>, %11, %cst_6 [1] : vector<8x512xf32> to vector<8xf32>
    %13 = vector.shape_cast %12 : vector<8xf32> to vector<8x1xf32>
    %cst_7 = arith.constant 0.001953125 : f32
    %14 = vector.broadcast %cst_7 : f32 to vector<8x1xf32>
    %15 = arith.mulf %10, %14 : vector<8x1xf32>
    %cst_8 = arith.constant 0.001953125 : f32
    %16 = vector.broadcast %cst_8 : f32 to vector<8x1xf32>
    %17 = arith.mulf %13, %16 : vector<8x1xf32>
    %18 = arith.mulf %15, %15 : vector<8x1xf32>
    %19 = arith.subf %17, %18 : vector<8x1xf32>
    %c0_9 = arith.constant 0 : index
    %c0_10 = arith.constant 0 : index
    %c0_11 = arith.constant 0 : index
    %20 = vector.load %arg4[%c0_9, %c0_10, %c0_11] : memref<1x8x1xf32, #tpu.memory_space<vmem>>, vector<1x8x1xf32>
    %21 = vector.shape_cast %20 : vector<1x8x1xf32> to vector<8x1xf32>
    %cst_12 = arith.constant 9.99999974E-6 : f32
    %22 = vector.broadcast %cst_12 : f32 to vector<8x1xf32>
    %23 = arith.addf %19, %22 : vector<8x1xf32>
    %24 = math.rsqrt %23 : vector<8x1xf32>
    %25 = arith.mulf %21, %24 : vector<8x1xf32>
    %26 = vector.broadcast %25 : vector<8x1xf32> to vector<8x512xf32>
    %27 = arith.mulf %8, %26 : vector<8x512xf32>
    %c0_13 = arith.constant 0 : index
    %c0_14 = arith.constant 0 : index
    %c0_15 = arith.constant 0 : index
    %28 = vector.load %arg5[%c0_13, %c0_14, %c0_15] : memref<1x8x1xf32, #tpu.memory_space<vmem>>, vector<1x8x1xf32>
    %29 = vector.shape_cast %28 : vector<1x8x1xf32> to vector<8x1xf32>
    %30 = arith.mulf %15, %25 : vector<8x1xf32>
    %31 = arith.subf %29, %30 : vector<8x1xf32>
    %32 = vector.broadcast %31 : vector<8x1xf32> to vector<8x512xf32>
    %33 = arith.addf %27, %32 : vector<8x512xf32>
    %c17_i32 = arith.constant 17 : i32
    %34 = tpu.dynamic_rotate %33 by %c17_i32 dim 1 : vector<8x512xf32>, i32 -> vector<8x512xf32>
    %c0_16 = arith.constant 0 : index
    %c0_17 = arith.constant 0 : index
    %35 = vector.load %arg2[%c0_16, %c0_17] : memref<9x512xf32, #tpu.memory_space<vmem>>, vector<1x512xf32>
    %36 = vector.broadcast %35 : vector<1x512xf32> to vector<8x512xf32>
    %37 = arith.mulf %34, %36 : vector<8x512xf32>
    %c16_i32 = arith.constant 16 : i32
    %38 = tpu.dynamic_rotate %33 by %c16_i32 dim 1 : vector<8x512xf32>, i32 -> vector<8x512xf32>
    %c1 = arith.constant 1 : index
    %c0_18 = arith.constant 0 : index
    %39 = vector.load %arg2[%c1, %c0_18] : memref<9x512xf32, #tpu.memory_space<vmem>>, vector<1x512xf32>
    %40 = vector.broadcast %39 : vector<1x512xf32> to vector<8x512xf32>
    %41 = arith.mulf %38, %40 : vector<8x512xf32>
    %c15_i32 = arith.constant 15 : i32
    %42 = tpu.dynamic_rotate %33 by %c15_i32 dim 1 : vector<8x512xf32>, i32 -> vector<8x512xf32>
    %c2 = arith.constant 2 : index
    %c0_19 = arith.constant 0 : index
    %43 = vector.load %arg2[%c2, %c0_19] : memref<9x512xf32, #tpu.memory_space<vmem>>, vector<1x512xf32>
    %44 = vector.broadcast %43 : vector<1x512xf32> to vector<8x512xf32>
    %45 = arith.mulf %42, %44 : vector<8x512xf32>
    %c1_i32 = arith.constant 1 : i32
    %46 = tpu.dynamic_rotate %33 by %c1_i32 dim 1 : vector<8x512xf32>, i32 -> vector<8x512xf32>
    %c3 = arith.constant 3 : index
    %c0_20 = arith.constant 0 : index
    %47 = vector.load %arg2[%c3, %c0_20] : memref<9x512xf32, #tpu.memory_space<vmem>>, vector<1x512xf32>
    %48 = vector.broadcast %47 : vector<1x512xf32> to vector<8x512xf32>
    %49 = arith.mulf %46, %48 : vector<8x512xf32>
    %c511_i32 = arith.constant 511 : i32
    %50 = tpu.dynamic_rotate %33 by %c511_i32 dim 1 : vector<8x512xf32>, i32 -> vector<8x512xf32>
    %c5 = arith.constant 5 : index
    %c0_21 = arith.constant 0 : index
    %51 = vector.load %arg2[%c5, %c0_21] : memref<9x512xf32, #tpu.memory_space<vmem>>, vector<1x512xf32>
    %52 = vector.broadcast %51 : vector<1x512xf32> to vector<8x512xf32>
    %53 = arith.mulf %50, %52 : vector<8x512xf32>
    %c497_i32 = arith.constant 497 : i32
    %54 = tpu.dynamic_rotate %33 by %c497_i32 dim 1 : vector<8x512xf32>, i32 -> vector<8x512xf32>
    %c6 = arith.constant 6 : index
    %c0_22 = arith.constant 0 : index
    %55 = vector.load %arg2[%c6, %c0_22] : memref<9x512xf32, #tpu.memory_space<vmem>>, vector<1x512xf32>
    %56 = vector.broadcast %55 : vector<1x512xf32> to vector<8x512xf32>
    %57 = arith.mulf %54, %56 : vector<8x512xf32>
    %c496_i32 = arith.constant 496 : i32
    %58 = tpu.dynamic_rotate %33 by %c496_i32 dim 1 : vector<8x512xf32>, i32 -> vector<8x512xf32>
    %c7 = arith.constant 7 : index
    %c0_23 = arith.constant 0 : index
    %59 = vector.load %arg2[%c7, %c0_23] : memref<9x512xf32, #tpu.memory_space<vmem>>, vector<1x512xf32>
    %60 = vector.broadcast %59 : vector<1x512xf32> to vector<8x512xf32>
    %61 = arith.mulf %58, %60 : vector<8x512xf32>
    %c495_i32 = arith.constant 495 : i32
    %62 = tpu.dynamic_rotate %33 by %c495_i32 dim 1 : vector<8x512xf32>, i32 -> vector<8x512xf32>
    %c8 = arith.constant 8 : index
    %c0_24 = arith.constant 0 : index
    %63 = vector.load %arg2[%c8, %c0_24] : memref<9x512xf32, #tpu.memory_space<vmem>>, vector<1x512xf32>
    %64 = vector.broadcast %63 : vector<1x512xf32> to vector<8x512xf32>
    %65 = arith.mulf %62, %64 : vector<8x512xf32>
    %66 = tpu.concatenate %37, %41, %45, %49, %33, %53, %57, %61, %65 in 0 : vector<8x512xf32>, vector<8x512xf32>, vector<8x512xf32>, vector<8x512xf32>, vector<8x512xf32>, vector<8x512xf32>, vector<8x512xf32>, vector<8x512xf32>, vector<8x512xf32> -> vector<72x512xf32>
    %67 = arith.truncf %66 : vector<72x512xf32> to vector<72x512xbf16>
    %c0_25 = arith.constant 0 : index
    %c0_26 = arith.constant 0 : index
    %c0_27 = arith.constant 0 : index
    %68 = vector.load %arg6[%c0_25, %c0_26, %c0_27] : memref<1x4x72xf32, #tpu.memory_space<vmem>>, vector<1x4x72xf32>
    %69 = vector.shape_cast %68 : vector<1x4x72xf32> to vector<4x72xf32>
    %70 = arith.truncf %69 : vector<4x72xf32> to vector<4x72xbf16>
    %cst_28 = arith.constant dense<0.000000e+00> : vector<4x512xf32>
    %71 = tpu.matmul %70, %67, %cst_28 {dimension_numbers = #tpu.dot_dimension_numbers<[1], [0], [0], [1], [0, 0, 1, 1], [], []>} : vector<4x72xbf16>, vector<72x512xbf16>, vector<4x512xf32> -> vector<4x512xf32>
    %cst_29 = arith.constant dense<0.000000e+00> : vector<4xf32>
    %72 = vector.multi_reduction <add>, %71, %cst_29 [1] : vector<4x512xf32> to vector<4xf32>
    %73 = vector.shape_cast %72 : vector<4xf32> to vector<4x1xf32>
    %74 = arith.mulf %71, %71 : vector<4x512xf32>
    %cst_30 = arith.constant dense<0.000000e+00> : vector<4xf32>
    %75 = vector.multi_reduction <add>, %74, %cst_30 [1] : vector<4x512xf32> to vector<4xf32>
    %76 = vector.shape_cast %75 : vector<4xf32> to vector<4x1xf32>
    %cst_31 = arith.constant 0.001953125 : f32
    %77 = vector.broadcast %cst_31 : f32 to vector<4x1xf32>
    %78 = arith.mulf %73, %77 : vector<4x1xf32>
    %cst_32 = arith.constant 0.001953125 : f32
    %79 = vector.broadcast %cst_32 : f32 to vector<4x1xf32>
    %80 = arith.mulf %76, %79 : vector<4x1xf32>
    %81 = arith.mulf %78, %78 : vector<4x1xf32>
    %82 = arith.subf %80, %81 : vector<4x1xf32>
    %c0_33 = arith.constant 0 : index
    %c0_34 = arith.constant 0 : index
    %c0_35 = arith.constant 0 : index
    %83 = vector.load %arg7[%c0_33, %c0_34, %c0_35] : memref<1x4x1xf32, #tpu.memory_space<vmem>>, vector<1x4x1xf32>
    %84 = vector.shape_cast %83 : vector<1x4x1xf32> to vector<4x1xf32>
    %cst_36 = arith.constant 9.99999974E-6 : f32
    %85 = vector.broadcast %cst_36 : f32 to vector<4x1xf32>
    %86 = arith.addf %82, %85 : vector<4x1xf32>
    %87 = math.rsqrt %86 : vector<4x1xf32>
    %88 = arith.mulf %84, %87 : vector<4x1xf32>
    %89 = vector.broadcast %88 : vector<4x1xf32> to vector<4x512xf32>
    %90 = arith.mulf %71, %89 : vector<4x512xf32>
    %c0_37 = arith.constant 0 : index
    %c0_38 = arith.constant 0 : index
    %c0_39 = arith.constant 0 : index
    %91 = vector.load %arg8[%c0_37, %c0_38, %c0_39] : memref<1x4x1xf32, #tpu.memory_space<vmem>>, vector<1x4x1xf32>
    %92 = vector.shape_cast %91 : vector<1x4x1xf32> to vector<4x1xf32>
    %93 = arith.mulf %78, %88 : vector<4x1xf32>
    %94 = arith.subf %92, %93 : vector<4x1xf32>
    %95 = vector.broadcast %94 : vector<4x1xf32> to vector<4x512xf32>
    %96 = arith.addf %90, %95 : vector<4x512xf32>
    %cst_40 = arith.constant 0.00999999977 : f32
    %97 = vector.broadcast %cst_40 : f32 to vector<4x512xf32>
    %98 = arith.mulf %97, %96 : vector<4x512xf32>
    %99 = arith.maximumf %96, %98 : vector<4x512xf32>
    %cst_41 = arith.constant 0.00999999977 : f32
    %100 = vector.broadcast %cst_41 : f32 to vector<4x512xf32>
    %101 = arith.mulf %100, %3 : vector<4x512xf32>
    %102 = arith.maximumf %3, %101 : vector<4x512xf32>
    %103 = arith.addf %99, %102 : vector<4x512xf32>
    %c0_42 = arith.constant 0 : index
    %c0_43 = arith.constant 0 : index
    %104 = vector.load %arg9[%c0_42, %c0_43] : memref<4x512xf32, #tpu.memory_space<vmem>>, vector<4x512xf32>
    tpu.vector_store %arg9[%c0_42, %c0_43], %103 {strides = array<i32>} : memref<4x512xf32, #tpu.memory_space<vmem>>, vector<4x512xf32>,
    return
  }
  func.func @transform_0(%arg0: i32) -> (i32, i32) {
    %c0_i32 = arith.constant 0 : i32
    %c0_i32_0 = arith.constant 0 : i32
    %c0_i32_1 = arith.constant 0 : i32
    return %c0_i32, %c0_i32_0 : i32, i32
  }
  func.func @transform_1(%arg0: i32) -> (i32, i32) {
    %c0_i32 = arith.constant 0 : i32
    %c0_i32_0 = arith.constant 0 : i32
    %c0_i32_1 = arith.constant 0 : i32
    return %c0_i32, %c0_i32_0 : i32, i32
  }
  func.func @transform_2(%arg0: i32) -> (i32, i32, i32) {
    %c0_i32 = arith.constant 0 : i32
    %c0_i32_0 = arith.constant 0 : i32
    %c0_i32_1 = arith.constant 0 : i32
    return %arg0, %c0_i32, %c0_i32_0 : i32, i32, i32
  }
  func.func @transform_3(%arg0: i32) -> (i32, i32, i32) {
    %c0_i32 = arith.constant 0 : i32
    %c0_i32_0 = arith.constant 0 : i32
    %c0_i32_1 = arith.constant 0 : i32
    return %arg0, %c0_i32, %c0_i32_0 : i32, i32, i32
  }
  func.func @transform_4(%arg0: i32) -> (i32, i32, i32) {
    %c0_i32 = arith.constant 0 : i32
    %c0_i32_0 = arith.constant 0 : i32
    %c0_i32_1 = arith.constant 0 : i32
    return %arg0, %c0_i32, %c0_i32_0 : i32, i32, i32
  }
  func.func @transform_5(%arg0: i32) -> (i32, i32, i32) {
    %c0_i32 = arith.constant 0 : i32
    %c0_i32_0 = arith.constant 0 : i32
    %c0_i32_1 = arith.constant 0 : i32
    return %arg0, %c0_i32, %c0_i32_0 : i32, i32, i32
  }
  func.func @transform_6(%arg0: i32) -> (i32, i32, i32) {
    %c0_i32 = arith.constant 0 : i32
    %c0_i32_0 = arith.constant 0 : i32
    %c0_i32_1 = arith.constant 0 : i32
    return %arg0, %c0_i32, %c0_i32_0 : i32, i32, i32
  }
  func.func @transform_7(%arg0: i32) -> (i32, i32, i32) {
    %c0_i32 = arith.constant 0 : i32
    %c0_i32_0 = arith.constant 0 : i32
    %c0_i32_1 = arith.constant 0 : i32
    return %arg0, %c0_i32, %c0_i32_0 : i32, i32, i32
  }
  func.func @transform_8(%arg0: i32) -> (i32, i32) {
    %c0_i32 = arith.constant 0 : i32
    %c0_i32_0 = arith.constant 0 : i32
    %c0_i32_1 = arith.constant 0 : i32
    return %c0_i32, %c0_i32_0 : i32, i32
  }
}

</mosaic_0001>

<llo_original>
// kernel: residual_block_series.1
$region0: #{residual_block_series.1}
  #allocation0 [shape = 'u32[]', space=smem, size = 0x4, offset = 0x4, fixed_abs, tag = 'smem constant byte address 0x4 - core index']
  #allocation1 [shape = 'u32[144,128]{1,0:T(1,128)}', space=vmem, size = 0x12000, scoped, tag = 'internal scratch']
  %s0 = inlined_call_operand.vmem [shape: f32[4,512], index: 0, kind: input, shape index: {}]
  %s1 = inlined_call_operand.vmem [shape: f32[9,512], index: 1, kind: input, shape index: {}]
  %s2 = inlined_call_operand.vmem [shape: f32[2,8,4], index: 2, kind: input, shape index: {}]
  %s3 = inlined_call_operand.vmem [shape: f32[2,8,1], index: 3, kind: input, shape index: {}]
  %s4 = inlined_call_operand.vmem [shape: f32[2,8,1], index: 4, kind: input, shape index: {}]
  %s5 = inlined_call_operand.vmem [shape: f32[2,4,72], index: 5, kind: input, shape index: {}]
  %s6 = inlined_call_operand.vmem [shape: f32[2,4,1], index: 6, kind: input, shape index: {}]
  %s7 = inlined_call_operand.vmem [shape: f32[2,4,1], index: 7, kind: input, shape index: {}]
  %s8 = inlined_call_operand.vmem [shape: f32[4,512], index: 8, kind: output, shape index: {}]
  %s9 = sld [smem:[#allocation0]]
  $region69: #{residual_block_series.1} parent=0
    _
  %s11 = ssub.s32 1, %s9
  %s12 = scalar_select 0, %s11, %s9
  loop: start=0, step=1, limit=4
  $region2: #{residual_block_series.1} parent=0 // loop_pre_header
    _
  $region3: #{residual_block_series.1} parent=0 // loop_header
    %s14 = sphi 0, %s18
    %p15 = scmp.ge.s32.totalorder %s14, 4
    %s22 = sphi 0, %s22
    %s24 = sphi 0, %s22
    %s25 = sphi 0, %s24
    %s39 = sphi 0, %s25
    %s43 = sphi 0, %s43
    %s45 = sphi 0, %s43
    %s46 = sphi 0, %s45
    %s60 = sphi 0, %s46
    %s66 = sphi 0, %s68
    %s69 = sphi 0, %s66
    %s70 = sphi 0, %s69
    %s86 = sphi 0, %s70
    %s92 = sphi 0, %s94
    %s95 = sphi 0, %s92
    %s96 = sphi 0, %s95
    %s112 = sphi 0, %s96
    %s118 = sphi 0, %s120
    %s121 = sphi 0, %s118
    %s122 = sphi 0, %s121
    %s138 = sphi 0, %s122
    %s144 = sphi 0, %s146
    %s147 = sphi 0, %s144
    %s148 = sphi 0, %s147
    %s164 = sphi 0, %s148
    %s170 = sphi 0, %s172
    %s173 = sphi 0, %s170
    %s174 = sphi 0, %s173
    %s190 = sphi 0, %s174
    %s196 = sphi 0, %s198
    %s199 = sphi 0, %s196
    %s200 = sphi 0, %s199
    %s216 = sphi 0, %s200
    %s220 = sphi 0, %s220
    %s222 = sphi 0, %s220
    %s223 = sphi 0, %s222
    %s237 = sphi 0, %s223
  $region4: #{residual_block_series.1} parent=0 // loop_header_branch
    %17 = sbr.rel (%p15) target = $region8
  $region5: #{residual_block_series.1} parent=0 // loop_body
    %s19 = ssub.s32 %s14, 1
    %s20 = ssub.s32 %s14, 2
    %s21 = sadd.s32 %s14, 1
    %s23 = sadd.s32 %s22, 1
    %p26 = scmp.eq.s32.totalorder %s14, 1
    %p27 = scmp.ne.s32.totalorder %s22, %s24
    %p28 = scmp.eq.s32.totalorder %s14, 0
    %p29 = por %p27, %p28
    %p30 = scmp.ne.s32.totalorder %s22, %s24
    %p31 = scmp.eq.s32.totalorder %s19, 1
    %p32 = por %p30, %p31
    %p33 = scmp.ne.s32.totalorder %s24, %s25
    %p34 = scmp.eq.s32.totalorder %s19, 0
    %p35 = por %p33, %p34
    %p36 = scmp.ne.s32.totalorder %s24, %s25
    %p37 = scmp.eq.s32.totalorder %s20, 1
    %p38 = por %p36, %p37
    %p40 = scmp.ne.s32.totalorder %s25, %s39
    %p41 = scmp.eq.s32.totalorder %s20, 0
    %p42 = por %p40, %p41
    %s44 = sadd.s32 %s43, 1
    %p47 = scmp.eq.s32.totalorder %s14, 1
    %p48 = scmp.ne.s32.totalorder %s43, %s45
    %p49 = scmp.eq.s32.totalorder %s14, 0
    %p50 = por %p48, %p49
    %p51 = scmp.ne.s32.totalorder %s43, %s45
    %p52 = scmp.eq.s32.totalorder %s19, 1
    %p53 = por %p51, %p52
    %p54 = scmp.ne.s32.totalorder %s45, %s46
    %p55 = scmp.eq.s32.totalorder %s19, 0
    %p56 = por %p54, %p55
    %p57 = scmp.ne.s32.totalorder %s45, %s46
    %p58 = scmp.eq.s32.totalorder %s20, 1
    %p59 = por %p57, %p58
    %p61 = scmp.ne.s32.totalorder %s46, %s60
    %p62 = scmp.eq.s32.totalorder %s20, 0
    %p63 = por %p61, %p62
    %s64 = ssub.s32 %s14, %s21
    %p65 = scmp.eq.s32.totalorder %s64, 0
    %s67 = sadd.s32 %s66, 1
    %s68 = scalar_select %p65, %s66, %s67
    %p71 = pneg %p65
    %p72 = scmp.eq.s32.totalorder %s14, 1
    %p73 = por %p71, %p72
    %p74 = scmp.ne.s32.totalorder %s66, %s69
    %p75 = scmp.eq.s32.totalorder %s14, 0
    %p76 = por %p74, %p75
    %p77 = scmp.ne.s32.totalorder %s66, %s69
    %p78 = scmp.eq.s32.totalorder %s19, 1
    %p79 = por %p77, %p78
    %p80 = scmp.ne.s32.totalorder %s69, %s70
    %p81 = scmp.eq.s32.totalorder %s19, 0
    %p82 = por %p80, %p81
    %p83 = scmp.ne.s32.totalorder %s69, %s70
    %p84 = scmp.eq.s32.totalorder %s20, 1
    %p85 = por %p83, %p84
    %p87 = scmp.ne.s32.totalorder %s70, %s86
    %p88 = scmp.eq.s32.totalorder %s20, 0
    %p89 = por %p87, %p88
    %s90 = ssub.s32 %s14, %s21
    %p91 = scmp.eq.s32.totalorder %s90, 0
    %s93 = sadd.s32 %s92, 1
    %s94 = scalar_select %p91, %s92, %s93
    %p97 = pneg %p91
    %p98 = scmp.eq.s32.totalorder %s14, 1
    %p99 = por %p97, %p98
    %p100 = scmp.ne.s32.totalorder %s92, %s95
    %p101 = scmp.eq.s32.totalorder %s14, 0
    %p102 = por %p100, %p101
    %p103 = scmp.ne.s32.totalorder %s92, %s95
    %p104 = scmp.eq.s32.totalorder %s19, 1
    %p105 = por %p103, %p104
    %p106 = scmp.ne.s32.totalorder %s95, %s96
    %p107 = scmp.eq.s32.totalorder %s19, 0
    %p108 = por %p106, %p107
    %p109 = scmp.ne.s32.totalorder %s95, %s96
    %p110 = scmp.eq.s32.totalorder %s20, 1
    %p111 = por %p109, %p110
    %p113 = scmp.ne.s32.totalorder %s96, %s112
    %p114 = scmp.eq.s32.totalorder %s20, 0
    %p115 = por %p113, %p114
    %s116 = ssub.s32 %s14, %s21
    %p117 = scmp.eq.s32.totalorder %s116, 0
    %s119 = sadd.s32 %s118, 1
    %s120 = scalar_select %p117, %s118, %s119
    %p123 = pneg %p117
    %p124 = scmp.eq.s32.totalorder %s14, 1
    %p125 = por %p123, %p124
    %p126 = scmp.ne.s32.totalorder %s118, %s121
    %p127 = scmp.eq.s32.totalorder %s14, 0
    %p128 = por %p126, %p127
    %p129 = scmp.ne.s32.totalorder %s118, %s121
    %p130 = scmp.eq.s32.totalorder %s19, 1
    %p131 = por %p129, %p130
    %p132 = scmp.ne.s32.totalorder %s121, %s122
    %p133 = scmp.eq.s32.totalorder %s19, 0
    %p134 = por %p132, %p133
    %p135 = scmp.ne.s32.totalorder %s121, %s122
    %p136 = scmp.eq.s32.totalorder %s20, 1
    %p137 = por %p135, %p136
    %p139 = scmp.ne.s32.totalorder %s122, %s138
    %p140 = scmp.eq.s32.totalorder %s20, 0
    %p141 = por %p139, %p140
    %s142 = ssub.s32 %s14, %s21
    %p143 = scmp.eq.s32.totalorder %s142, 0
    %s145 = sadd.s32 %s144, 1
    %s146 = scalar_select %p143, %s144, %s145
    %p149 = pneg %p143
    %p150 = scmp.eq.s32.totalorder %s14, 1
    %p151 = por %p149, %p150
    %p152 = scmp.ne.s32.totalorder %s144, %s147
    %p153 = scmp.eq.s32.totalorder %s14, 0
    %p154 = por %p152, %p153
    %p155 = scmp.ne.s32.totalorder %s144, %s147
    %p156 = scmp.eq.s32.totalorder %s19, 1
    %p157 = por %p155, %p156
    %p158 = scmp.ne.s32.totalorder %s147, %s148
    %p159 = scmp.eq.s32.totalorder %s19, 0
    %p160 = por %p158, %p159
    %p161 = scmp.ne.s32.totalorder %s147, %s148
    %p162 = scmp.eq.s32.totalorder %s20, 1
    %p163 = por %p161, %p162
    %p165 = scmp.ne.s32.totalorder %s148, %s164
    %p166 = scmp.eq.s32.totalorder %s20, 0
    %p167 = por %p165, %p166
    %s168 = ssub.s32 %s14, %s21
    %p169 = scmp.eq.s32.totalorder %s168, 0
    %s171 = sadd.s32 %s170, 1
    %s172 = scalar_select %p169, %s170, %s171
    %p175 = pneg %p169
    %p176 = scmp.eq.s32.totalorder %s14, 1
    %p177 = por %p175, %p176
    %p178 = scmp.ne.s32.totalorder %s170, %s173
    %p179 = scmp.eq.s32.totalorder %s14, 0
    %p180 = por %p178, %p179
    %p181 = scmp.ne.s32.totalorder %s170, %s173
    %p182 = scmp.eq.s32.totalorder %s19, 1
    %p183 = por %p181, %p182
    %p184 = scmp.ne.s32.totalorder %s173, %s174
    %p185 = scmp.eq.s32.totalorder %s19, 0
    %p186 = por %p184, %p185
    %p187 = scmp.ne.s32.totalorder %s173, %s174
    %p188 = scmp.eq.s32.totalorder %s20, 1
    %p189 = por %p187, %p188
    %p191 = scmp.ne.s32.totalorder %s174, %s190
    %p192 = scmp.eq.s32.totalorder %s20, 0
    %p193 = por %p191, %p192
    %s194 = ssub.s32 %s14, %s21
    %p195 = scmp.eq.s32.totalorder %s194, 0
    %s197 = sadd.s32 %s196, 1
    %s198 = scalar_select %p195, %s196, %s197
    %p201 = pneg %p195
    %p202 = scmp.eq.s32.totalorder %s14, 1
    %p203 = por %p201, %p202
    %p204 = scmp.ne.s32.totalorder %s196, %s199
    %p205 = scmp.eq.s32.totalorder %s14, 0
    %p206 = por %p204, %p205
    %p207 = scmp.ne.s32.totalorder %s196, %s199
    %p208 = scmp.eq.s32.totalorder %s19, 1
    %p209 = por %p207, %p208
    %p210 = scmp.ne.s32.totalorder %s199, %s200
    %p211 = scmp.eq.s32.totalorder %s19, 0
    %p212 = por %p210, %p211
    %p213 = scmp.ne.s32.totalorder %s199, %s200
    %p214 = scmp.eq.s32.totalorder %s20, 1
    %p215 = por %p213, %p214
    %p217 = scmp.ne.s32.totalorder %s200, %s216
    %p218 = scmp.eq.s32.totalorder %s20, 0
    %p219 = por %p217, %p218
    %s221 = sadd.s32 %s220, 1
    %p224 = scmp.eq.s32.totalorder %s14, 1
    %p225 = scmp.ne.s32.totalorder %s220, %s222
    %p226 = scmp.eq.s32.totalorder %s14, 0
    %p227 = por %p225, %p226
    %p228 = scmp.ne.s32.totalorder %s220, %s222
    %p229 = scmp.eq.s32.totalorder %s19, 1
    %p230 = por %p228, %p229
    %p231 = scmp.ne.s32.totalorder %s222, %s223
    %p232 = scmp.eq.s32.totalorder %s19, 0
    %p233 = por %p231, %p232
    %p234 = scmp.ne.s32.totalorder %s222, %s223
    %p235 = scmp.eq.s32.totalorder %s20, 1
    %p236 = por %p234, %p235
    %p238 = scmp.ne.s32.totalorder %s223, %s237
    %p239 = scmp.eq.s32.totalorder %s20, 0
    %p240 = por %p238, %p239
    %p241 = scmp.le.s32.totalorder 1, %s14
    %p242 = scmp.lt.s32.totalorder %s14, 3
    %p243 = pnand %p241, %p242
    %p244 = pneg %p243
    // Predicated region
    $region9: #{residual_block_series.1} parent=5 // pred_check
      _
    $region10: #{residual_block_series.1} parent=5 // pred_check_branch
      %246 = sbr.rel (%p243) target = $region12
    $region11: #{residual_block_series.1} parent=5 // pred_region
      %s247 = ssub.s32 %s14, 1
      // Predicated region
      $region13: #{residual_block_series.1} parent=11 // pred_check
        %p248 = pneg %p35
      $region14: #{residual_block_series.1} parent=11 // pred_check_branch
        %250 = sbr.rel (%p248) target = $region16
      $region15: #{residual_block_series.1} parent=11 // pred_region
        _
      $region16: #{residual_block_series.1} parent=11 // pred_fallthru
        _
      // Predicated region
      $region17: #{residual_block_series.1} parent=11 // pred_check
        %p251 = pneg %p56
      $region18: #{residual_block_series.1} parent=11 // pred_check_branch
        %253 = sbr.rel (%p251) target = $region20
      $region19: #{residual_block_series.1} parent=11 // pred_region
        _
      $region20: #{residual_block_series.1} parent=11 // pred_fallthru
        _
    $region12: #{residual_block_series.1} parent=5 // pred_fallthru
      _
    %p254 = scmp.lt.s32.totalorder %s14, 2
    // Predicated region
    $region21: #{residual_block_series.1} parent=5 // pred_check
      %p255 = pneg %p254
    $region22: #{residual_block_series.1} parent=5 // pred_check_branch
      %257 = sbr.rel (%p255) target = $region24
    $region23: #{residual_block_series.1} parent=5 // pred_region
      // Predicated region
      $region25: #{residual_block_series.1} parent=23 // pred_check
        %p258 = pneg %p76
      $region26: #{residual_block_series.1} parent=23 // pred_check_branch
        %260 = sbr.rel (%p258) target = $region28
      $region27: #{residual_block_series.1} parent=23 // pred_region
        %p261 = scmp.lt.s32.totalorder %s14, 1
        %s262 = scalar_select %p261, %s14, 1
        %s263 = smul.addr %s262, 8
        %s264 = scalar_lea.vmem %s2, %s263
      $region28: #{residual_block_series.1} parent=23 // pred_fallthru
        _
      // Predicated region
      $region29: #{residual_block_series.1} parent=23 // pred_check
        %p265 = pneg %p102
      $region30: #{residual_block_series.1} parent=23 // pred_check_branch
        %267 = sbr.rel (%p265) target = $region32
      $region31: #{residual_block_series.1} parent=23 // pred_region
        %p268 = scmp.lt.s32.totalorder %s14, 1
        %s269 = scalar_select %p268, %s14, 1
        %s270 = smul.addr %s269, 8
        %s271 = scalar_lea.vmem %s3, %s270
      $region32: #{residual_block_series.1} parent=23 // pred_fallthru
        _
      // Predicated region
      $region33: #{residual_block_series.1} parent=23 // pred_check
        %p272 = pneg %p128
      $region34: #{residual_block_series.1} parent=23 // pred_check_branch
        %274 = sbr.rel (%p272) target = $region36
      $region35: #{residual_block_series.1} parent=23 // pred_region
        %p275 = scmp.lt.s32.totalorder %s14, 1
        %s276 = scalar_select %p275, %s14, 1
        %s277 = smul.addr %s276, 8
        %s278 = scalar_lea.vmem %s4, %s277
      $region36: #{residual_block_series.1} parent=23 // pred_fallthru
        _
      // Predicated region
      $region37: #{residual_block_series.1} parent=23 // pred_check
        %p279 = pneg %p154
      $region38: #{residual_block_series.1} parent=23 // pred_check_branch
        %281 = sbr.rel (%p279) target = $region40
      $region39: #{residual_block_series.1} parent=23 // pred_region
        %p282 = scmp.lt.s32.totalorder %s14, 1
        %s283 = scalar_select %p282, %s14, 1
        %s284 = smul.addr %s283, 4
        %s285 = scalar_lea.vmem %s5, %s284
      $region40: #{residual_block_series.1} parent=23 // pred_fallthru
        _
      // Predicated region
      $region41: #{residual_block_series.1} parent=23 // pred_check
        %p286 = pneg %p180
      $region42: #{residual_block_series.1} parent=23 // pred_check_branch
        %288 = sbr.rel (%p286) target = $region44
      $region43: #{residual_block_series.1} parent=23 // pred_region
        %p289 = scmp.lt.s32.totalorder %s14, 1
        %s290 = scalar_select %p289, %s14, 1
        %s291 = smul.addr %s290, 4
        %s292 = scalar_lea.vmem %s6, %s291
      $region44: #{residual_block_series.1} parent=23 // pred_fallthru
        _
      // Predicated region
      $region45: #{residual_block_series.1} parent=23 // pred_check
        %p293 = pneg %p206
      $region46: #{residual_block_series.1} parent=23 // pred_check_branch
        %295 = sbr.rel (%p293) target = $region48
      $region47: #{residual_block_series.1} parent=23 // pred_region
        %p296 = scmp.lt.s32.totalorder %s14, 1
        %s297 = scalar_select %p296, %s14, 1
        %s298 = smul.addr %s297, 4
        %s299 = scalar_lea.vmem %s7, %s298
      $region48: #{residual_block_series.1} parent=23 // pred_fallthru
        _
    $region24: #{residual_block_series.1} parent=5 // pred_fallthru
      _
    %p300 = scmp.le.s32.totalorder 1, %s14
    %p301 = scmp.lt.s32.totalorder %s14, 3
    %p302 = pnand %p300, %p301
    %p303 = pneg %p302
    // Predicated region
    $region49: #{residual_block_series.1} parent=5 // pred_check
      _
    $region50: #{residual_block_series.1} parent=5 // pred_check_branch
      %305 = sbr.rel (%p302) target = $region52
    $region51: #{residual_block_series.1} parent=5 // pred_region
      %s306 = ssub.s32 %s14, 1
      %p307 = pneg %p35
      %p308 = pneg %p32
      %p309 = pneg %p56
      %p310 = pneg %p53
      %p311 = scmp.lt.s32.totalorder %s19, 1
      %s312 = scalar_select %p311, %s19, 1
      %s313 = smul.addr %s312, 8
      %s314 = scalar_lea.vmem %s2, %s313
      %p315 = pneg %p82
      %p316 = pneg %p79
      %p317 = scmp.lt.s32.totalorder %s19, 1
      %s318 = scalar_select %p317, %s19, 1
      %s319 = smul.addr %s318, 8
      %s320 = scalar_lea.vmem %s3, %s319
      %p321 = pneg %p108
      %p322 = pneg %p105
      %p323 = scmp.lt.s32.totalorder %s19, 1
      %s324 = scalar_select %p323, %s19, 1
      %s325 = smul.addr %s324, 8
      %s326 = scalar_lea.vmem %s4, %s325
      %p327 = pneg %p134
      %p328 = pneg %p131
      %p329 = scmp.lt.s32.totalorder %s19, 1
      %s330 = scalar_select %p329, %s19, 1
      %s331 = smul.addr %s330, 4
      %s332 = scalar_lea.vmem %s5, %s331
      %p333 = pneg %p160
      %p334 = pneg %p157
      %p335 = scmp.lt.s32.totalorder %s19, 1
      %s336 = scalar_select %p335, %s19, 1
      %s337 = smul.addr %s336, 4
      %s338 = scalar_lea.vmem %s6, %s337
      %p339 = pneg %p186
      %p340 = pneg %p183
      %p341 = scmp.lt.s32.totalorder %s19, 1
      %s342 = scalar_select %p341, %s19, 1
      %s343 = smul.addr %s342, 4
      %s344 = scalar_lea.vmem %s7, %s343
      %p345 = pneg %p212
      %p346 = pneg %p209
      %p347 = pneg %p233
      %p348 = pneg %p230
      %p349 = scmp.lt.s32.totalorder %s19, 1
      %s350 = scalar_select %p349, %s19, 1
      %s351 = smul.addr %s350, 8
      %s352 = scalar_lea.vmem %s2, %s351
      %p353 = scmp.lt.s32.totalorder %s19, 1
      %s354 = scalar_select %p353, %s19, 1
      %s355 = smul.addr %s354, 8
      %s356 = scalar_lea.vmem %s3, %s355
      %p357 = scmp.lt.s32.totalorder %s19, 1
      %s358 = scalar_select %p357, %s19, 1
      %s359 = smul.addr %s358, 8
      %s360 = scalar_lea.vmem %s4, %s359
      %p361 = scmp.lt.s32.totalorder %s19, 1
      %s362 = scalar_select %p361, %s19, 1
      %s363 = smul.addr %s362, 4
      %s364 = scalar_lea.vmem %s5, %s363
      %p365 = scmp.lt.s32.totalorder %s19, 1
      %s366 = scalar_select %p365, %s19, 1
      %s367 = smul.addr %s366, 4
      %s368 = scalar_lea.vmem %s6, %s367
      %p369 = scmp.lt.s32.totalorder %s19, 1
      %s370 = scalar_select %p369, %s19, 1
      %s371 = smul.addr %s370, 4
      %s372 = scalar_lea.vmem %s7, %s371
      %p374 = scmp.eq.s32.totalorder %s19, 0
      // Predicated region
      $region53: #{residual_block_series.1} parent=51 // pred_check
        %p375 = pneg %p374
      $region54: #{residual_block_series.1} parent=51 // pred_check_branch
        %377 = sbr.rel (%p375) target = $region56
      $region55: #{residual_block_series.1} parent=51 // pred_region
        %v378 = vld [vmem:[%s0] sm:$0xff]
        %v379 = vld [vmem:[%s0 + $0x8] sm:$0xff]
        %380 = vst [vmem:[%s8] sm:$0xff] %v378
        %381 = vst [vmem:[%s8 + $0x8] sm:$0xff] %v379
      $region56: #{residual_block_series.1} parent=51 // pred_fallthru
        _
      %v382 = vld [vmem:[%s8] sm:$0xff]
      %v383 = vld [vmem:[%s8 + $0x8] sm:$0xff]
      %v384 = vld [vmem:[%s352] sm:$0xff]
      %v385 = vpack.c.bf16 %v384, %v384
      %v388 = vcombine.high %v382, %v382
      %v389 = vcombine.high %v383, %v383
      %v392 = vpack.c.bf16 %v382, %v382
      %v393 = vpack.c.bf16 %v388, %v388
      %v394 = vpack.c.bf16 %v383, %v383
      %v395 = vpack.c.bf16 %v389, %v389
      %vm396 = vcmask 31744
      %v398 = vsel %vm396, %v385, 0
      %vm400 = vcmask 1041408
      %v402 = vsel %vm400, %v392, 0
      %v405 = vsel %vm400, %v393, 0
      %v408 = vsel %vm400, %v394, 0
      %v411 = vsel %vm400, %v395, 0
      %413 = vmatprep.subr.bf16.mxu0 %v405
      %414 = vmatpush1.bf16.msra.mxu0 %v402
      %415 = vmatprep.subr.bf16.mxu0 0
      %416 = vmatpush1.bf16.msra.mxu0 0
      %417 = vmatprep.subr.bf16.mxu0 0
      %418 = vmatpush1.bf16.msra.mxu0 0
      %419 = vmatprep.subr.bf16.mxu0 0
      %420 = vmatpush1.bf16.msra.mxu0 0
      %421 = vmatprep.subr.bf16.mxu0 0
      %422 = vmatpush1.bf16.msra.mxu0 0
      %423 = vmatprep.subr.bf16.mxu0 0
      %424 = vmatpush1.bf16.msra.mxu0 0
      %425 = vmatprep.subr.bf16.mxu0 0
      %426 = vmatpush1.bf16.msra.mxu0 0
      %427 = vmatprep.subr.bf16.mxu0 0
      %428 = vmatpush1.bf16.msra.mxu0 0
      %429 = vmatprep.subr.bf16.mxu0 0
      %430 = vmatpush1.bf16.msra.mxu0 0
      %431 = vmatprep.subr.bf16.mxu0 0
      %432 = vmatpush1.bf16.msra.mxu0 0
      %433 = vmatprep.subr.bf16.mxu0 0
      %434 = vmatpush1.bf16.msra.mxu0 0
      %435 = vmatprep.subr.bf16.mxu0 0
      %436 = vmatpush1.bf16.msra.mxu0 0
      %437 = vmatprep.subr.bf16.mxu0 0
      %438 = vmatpush1.bf16.msra.mxu0 0
      %439 = vmatprep.subr.bf16.mxu0 0
      %440 = vmatpush1.bf16.msra.mxu0 0
      %441 = vmatprep.subr.bf16.mxu0 0
      %442 = vmatpush1.bf16.msra.mxu0 0
      %443 = vmatprep.subr.bf16.mxu0 0
      %444 = vmatpush1.bf16.msra.mxu0 0
      %445 = vmatprep.mubr.bf16.mxu0 0
      %446 = vmatmul.mubr.bf16.gmra.mrb[0].mxu0 %v398
      %v447 = vpop.f32.mrb[0].mxu0
      %v448 = vadd.f32 0.0, %v447
      %v449 = vpop.f32.mrb[0].mxu0
      %v450 = vadd.f32 0.0, %v449
      %v451 = vpop.f32.mrb[0].mxu0
      %v452 = vpop.f32.mrb[0].mxu0
      %453 = vdwg.mxu0
      %454 = vmatprep.subr.bf16.mxu0 %v411
      %455 = vmatpush1.bf16.msra.mxu0 %v408
      %456 = vmatprep.subr.bf16.mxu0 0
      %457 = vmatpush1.bf16.msra.mxu0 0
      %458 = vmatprep.subr.bf16.mxu0 0
      %459 = vmatpush1.bf16.msra.mxu0 0
      %460 = vmatprep.subr.bf16.mxu0 0
      %461 = vmatpush1.bf16.msra.mxu0 0
      %462 = vmatprep.subr.bf16.mxu0 0
      %463 = vmatpush1.bf16.msra.mxu0 0
      %464 = vmatprep.subr.bf16.mxu0 0
      %465 = vmatpush1.bf16.msra.mxu0 0
      %466 = vmatprep.subr.bf16.mxu0 0
      %467 = vmatpush1.bf16.msra.mxu0 0
      %468 = vmatprep.subr.bf16.mxu0 0
      %469 = vmatpush1.bf16.msra.mxu0 0
      %470 = vmatprep.subr.bf16.mxu0 0
      %471 = vmatpush1.bf16.msra.mxu0 0
      %472 = vmatprep.subr.bf16.mxu0 0
      %473 = vmatpush1.bf16.msra.mxu0 0
      %474 = vmatprep.subr.bf16.mxu0 0
      %475 = vmatpush1.bf16.msra.mxu0 0
      %476 = vmatprep.subr.bf16.mxu0 0
      %477 = vmatpush1.bf16.msra.mxu0 0
      %478 = vmatprep.subr.bf16.mxu0 0
      %479 = vmatpush1.bf16.msra.mxu0 0
      %480 = vmatprep.subr.bf16.mxu0 0
      %481 = vmatpush1.bf16.msra.mxu0 0
      %482 = vmatprep.subr.bf16.mxu0 0
      %483 = vmatpush1.bf16.msra.mxu0 0
      %484 = vmatprep.subr.bf16.mxu0 0
      %485 = vmatpush1.bf16.msra.mxu0 0
      %486 = vmatprep.mubr.bf16.mxu0 0
      %487 = vmatmul.mubr.bf16.gmra.mrb[0].mxu0 %v398
      %v488 = vpop.f32.mrb[0].mxu0
      %v489 = vadd.f32 0.0, %v488
      %v490 = vpop.f32.mrb[0].mxu0
      %v491 = vadd.f32 0.0, %v490
      %v492 = vpop.f32.mrb[0].mxu0
      %v493 = vpop.f32.mrb[0].mxu0
      %494 = vdwg.mxu0
      %v495 = vadd.f32 %v448, %v450
      %v496 = vadd.f32 %v495, %v489
      %v497 = vadd.f32 %v496, %v491
      %498 = vadd.xlane.f32.xlu0 %v497
      %v499 = vpop.xlane.xlu0 %498
      %v500 = vmul.f32 %v448, %v448
      %v501 = vmul.f32 %v450, %v450
      %v502 = vmul.f32 %v489, %v489
      %v503 = vmul.f32 %v491, %v491
      %v504 = vadd.f32 %v500, %v501
      %v505 = vadd.f32 %v504, %v502
      %v506 = vadd.f32 %v505, %v503
      %507 = vadd.xlane.f32.xlu0 %v506
      %v508 = vpop.xlane.xlu0 %507
      %v509 = vmul.f32 %v499, 0.001953125
      %v510 = vmul.f32 %v508, 0.001953125
      %v511 = vmul.f32 %v509, %v509
      %v512 = vsub.f32 %v510, %v511
      %v513 = vld [vmem:[%s356] sm:$0xff]
      %v514 = vadd.f32 %v512, 1e-05
      %v515 = vrsqrt.pop %v514
      %v516 = vmul.f32 %v513, %v515
      %518 = vset.pattern.permute.xlu0 0
      %519 = vperm.xlu0 %518, %v516
      %v520 = vpop.permute.xlu0 %519
      %v522 = vmul.f32 %v448, %v520
      %v523 = vmul.f32 %v450, %v520
      %v524 = vmul.f32 %v489, %v520
      %v525 = vmul.f32 %v491, %v520
      %v526 = vld [vmem:[%s360] sm:$0xff]
      %v527 = vmul.f32 %v509, %v516
      %v528 = vsub.f32 %v526, %v527
      %530 = vset.pattern.permute.xlu0 0
      %531 = vperm.xlu0 %530, %v528
      %v532 = vpop.permute.xlu0 %531
      %v534 = vadd.f32 %v522, %v532
      %v535 = vadd.f32 %v523, %v532
      %v536 = vadd.f32 %v524, %v532
      %v537 = vadd.f32 %v525, %v532
      %538 = vrot.lane.b32.xlu0 %v534, 17
      %v539 = vpop.permute.xlu0 %538
      %540 = vrot.lane.b32.xlu0 %v535, 17
      %v541 = vpop.permute.xlu0 %540
      %542 = vrot.lane.b32.xlu0 %v536, 17
      %v543 = vpop.permute.xlu0 %542
      %544 = vrot.lane.b32.xlu0 %v537, 17
      %v545 = vpop.permute.xlu0 %544
      %v546 = vlaneseq
      %v547 = vand.u32 %v546, 127
      %vm548 = vcmp.lt.s32.totalorder %v547, 17
      %v549 = vsel %vm548, %v543, %v545
      %v550 = vsel %vm548, %v541, %v543
      %v551 = vsel %vm548, %v539, %v541
      %v552 = vsel %vm548, %v545, %v539
      %v553 = vld [vmem:[%s1] ss:$8 sm:$0xf]
      %v555 = vlaneseq
      %v556 = vshrl.u32 %v555, 7
      %v557 = vsub.s32 0, %v556
      %v558 = vrot.slane %v553, %v557
      %v559 = vlaneseq
      %v560 = vshrl.u32 %v559, 7
      %v561 = vsub.s32 1, %v560
      %v562 = vrot.slane %v553, %v561
      %v563 = vlaneseq
      %v564 = vshrl.u32 %v563, 7
      %v565 = vsub.s32 2, %v564
      %v566 = vrot.slane %v553, %v565
      %v567 = vlaneseq
      %v568 = vshrl.u32 %v567, 7
      %v569 = vsub.s32 3, %v568
      %v570 = vrot.slane %v553, %v569
      %v575 = vmul.f32 %v552, %v558
      %v576 = vmul.f32 %v551, %v562
      %v577 = vmul.f32 %v550, %v566
      %v578 = vmul.f32 %v549, %v570
      %579 = vrot.lane.b32.xlu0 %v534, 16
      %v580 = vpop.permute.xlu0 %579
      %581 = vrot.lane.b32.xlu0 %v535, 16
      %v582 = vpop.permute.xlu0 %581
      %583 = vrot.lane.b32.xlu0 %v536, 16
      %v584 = vpop.permute.xlu0 %583
      %585 = vrot.lane.b32.xlu0 %v537, 16
      %v586 = vpop.permute.xlu0 %585
      %vm587 = vcmp.lt.s32.totalorder %v547, 16
      %v588 = vsel %vm587, %v584, %v586
      %v589 = vsel %vm587, %v582, %v584
      %v590 = vsel %vm587, %v580, %v582
      %v591 = vsel %vm587, %v586, %v580
      %s592 = scalar_lea.vmem %s1, 1
      %v593 = vld [vmem:[%s592] ss:$8 sm:$0xf]
      %v595 = vlaneseq
      %v596 = vshrl.u32 %v595, 7
      %v597 = vsub.s32 0, %v596
      %v598 = vrot.slane %v593, %v597
      %v599 = vlaneseq
      %v600 = vshrl.u32 %v599, 7
      %v601 = vsub.s32 1, %v600
      %v602 = vrot.slane %v593, %v601
      %v603 = vlaneseq
      %v604 = vshrl.u32 %v603, 7
      %v605 = vsub.s32 2, %v604
      %v606 = vrot.slane %v593, %v605
      %v607 = vlaneseq
      %v608 = vshrl.u32 %v607, 7
      %v609 = vsub.s32 3, %v608
      %v610 = vrot.slane %v593, %v609
      %v615 = vmul.f32 %v591, %v598
      %v616 = vmul.f32 %v590, %v602
      %v617 = vmul.f32 %v589, %v606
      %v618 = vmul.f32 %v588, %v610
      %619 = vrot.lane.b32.xlu0 %v534, 15
      %v620 = vpop.permute.xlu0 %619
      %621 = vrot.lane.b32.xlu0 %v535, 15
      %v622 = vpop.permute.xlu0 %621
      %623 = vrot.lane.b32.xlu0 %v536, 15
      %v624 = vpop.permute.xlu0 %623
      %625 = vrot.lane.b32.xlu0 %v537, 15
      %v626 = vpop.permute.xlu0 %625
      %vm627 = vcmp.lt.s32.totalorder %v547, 15
      %v628 = vsel %vm627, %v624, %v626
      %v629 = vsel %vm627, %v622, %v624
      %v630 = vsel %vm627, %v620, %v622
      %v631 = vsel %vm627, %v626, %v620
      %s632 = scalar_lea.vmem %s1, 2
      %v633 = vld [vmem:[%s632] ss:$8 sm:$0xf]
      %v635 = vlaneseq
      %v636 = vshrl.u32 %v635, 7
      %v637 = vsub.s32 0, %v636
      %v638 = vrot.slane %v633, %v637
      %v639 = vlaneseq
      %v640 = vshrl.u32 %v639, 7
      %v641 = vsub.s32 1, %v640
      %v642 = vrot.slane %v633, %v641
      %v643 = vlaneseq
      %v644 = vshrl.u32 %v643, 7
      %v645 = vsub.s32 2, %v644
      %v646 = vrot.slane %v633, %v645
      %v647 = vlaneseq
      %v648 = vshrl.u32 %v647, 7
      %v649 = vsub.s32 3, %v648
      %v650 = vrot.slane %v633, %v649
      %v655 = vmul.f32 %v631, %v638
      %v656 = vmul.f32 %v630, %v642
      %v657 = vmul.f32 %v629, %v646
      %v658 = vmul.f32 %v628, %v650
      %659 = vrot.lane.b32.xlu0 %v534, 1
      %v660 = vpop.permute.xlu0 %659
      %661 = vrot.lane.b32.xlu0 %v535, 1
      %v662 = vpop.permute.xlu0 %661
      %663 = vrot.lane.b32.xlu0 %v536, 1
      %v664 = vpop.permute.xlu0 %663
      %665 = vrot.lane.b32.xlu0 %v537, 1
      %v666 = vpop.permute.xlu0 %665
      %vm667 = vcmp.lt.s32.totalorder %v547, 1
      %v668 = vsel %vm667, %v664, %v666
      %v669 = vsel %vm667, %v662, %v664
      %v670 = vsel %vm667, %v660, %v662
      %v671 = vsel %vm667, %v666, %v660
      %s672 = scalar_lea.vmem %s1, 3
      %v673 = vld [vmem:[%s672] ss:$8 sm:$0xf]
      %v675 = vlaneseq
      %v676 = vshrl.u32 %v675, 7
      %v677 = vsub.s32 0, %v676
      %v678 = vrot.slane %v673, %v677
      %v679 = vlaneseq
      %v680 = vshrl.u32 %v679, 7
      %v681 = vsub.s32 1, %v680
      %v682 = vrot.slane %v673, %v681
      %v683 = vlaneseq
      %v684 = vshrl.u32 %v683, 7
      %v685 = vsub.s32 2, %v684
      %v686 = vrot.slane %v673, %v685
      %v687 = vlaneseq
      %v688 = vshrl.u32 %v687, 7
      %v689 = vsub.s32 3, %v688
      %v690 = vrot.slane %v673, %v689
      %v695 = vmul.f32 %v671, %v678
      %v696 = vmul.f32 %v670, %v682
      %v697 = vmul.f32 %v669, %v686
      %v698 = vmul.f32 %v668, %v690
      %699 = vrot.lane.b32.xlu0 %v534, 127
      %v700 = vpop.permute.xlu0 %699
      %701 = vrot.lane.b32.xlu0 %v535, 127
      %v702 = vpop.permute.xlu0 %701
      %703 = vrot.lane.b32.xlu0 %v536, 127
      %v704 = vpop.permute.xlu0 %703
      %705 = vrot.lane.b32.xlu0 %v537, 127
      %v706 = vpop.permute.xlu0 %705
      %vm707 = vcmp.lt.s32.totalorder %v547, 127
      %v708 = vsel %vm707, %v704, %v706
      %v709 = vsel %vm707, %v702, %v704
      %v710 = vsel %vm707, %v700, %v702
      %v711 = vsel %vm707, %v706, %v700
      %s712 = scalar_lea.vmem %s1, 5
      %v713 = vld [vmem:[%s712] ss:$8 sm:$0xf]
      %v715 = vlaneseq
      %v716 = vshrl.u32 %v715, 7
      %v717 = vsub.s32 0, %v716
      %v718 = vrot.slane %v713, %v717
      %v719 = vlaneseq
      %v720 = vshrl.u32 %v719, 7
      %v721 = vsub.s32 1, %v720
      %v722 = vrot.slane %v713, %v721
      %v723 = vlaneseq
      %v724 = vshrl.u32 %v723, 7
      %v725 = vsub.s32 2, %v724
      %v726 = vrot.slane %v713, %v725
      %v727 = vlaneseq
      %v728 = vshrl.u32 %v727, 7
      %v729 = vsub.s32 3, %v728
      %v730 = vrot.slane %v713, %v729
      %v735 = vmul.f32 %v710, %v718
      %v736 = vmul.f32 %v709, %v722
      %v737 = vmul.f32 %v708, %v726
      %v738 = vmul.f32 %v711, %v730
      %739 = vrot.lane.b32.xlu0 %v534, 113
      %v740 = vpop.permute.xlu0 %739
      %741 = vrot.lane.b32.xlu0 %v535, 113
      %v742 = vpop.permute.xlu0 %741
      %743 = vrot.lane.b32.xlu0 %v536, 113
      %v744 = vpop.permute.xlu0 %743
      %745 = vrot.lane.b32.xlu0 %v537, 113
      %v746 = vpop.permute.xlu0 %745
      %vm747 = vcmp.lt.s32.totalorder %v547, 113
      %v748 = vsel %vm747, %v744, %v746
      %v749 = vsel %vm747, %v742, %v744
      %v750 = vsel %vm747, %v740, %v742
      %v751 = vsel %vm747, %v746, %v740
      %s752 = scalar_lea.vmem %s1, 6
      %v753 = vld [vmem:[%s752] ss:$8 sm:$0xf]
      %v755 = vlaneseq
      %v756 = vshrl.u32 %v755, 7
      %v757 = vsub.s32 0, %v756
      %v758 = vrot.slane %v753, %v757
      %v759 = vlaneseq
      %v760 = vshrl.u32 %v759, 7
      %v761 = vsub.s32 1, %v760
      %v762 = vrot.slane %v753, %v761
      %v763 = vlaneseq
      %v764 = vshrl.u32 %v763, 7
      %v765 = vsub.s32 2, %v764
      %v766 = vrot.slane %v753, %v765
      %v767 = vlaneseq
      %v768 = vshrl.u32 %v767, 7
      %v769 = vsub.s32 3, %v768
      %v770 = vrot.slane %v753, %v769
      %v775 = vmul.f32 %v750, %v758
      %v776 = vmul.f32 %v749, %v762
      %v777 = vmul.f32 %v748, %v766
      %v778 = vmul.f32 %v751, %v770
      %779 = vrot.lane.b32.xlu0 %v534, 112
      %v780 = vpop.permute.xlu0 %779
      %781 = vrot.lane.b32.xlu0 %v535, 112
      %v782 = vpop.permute.xlu0 %781
      %783 = vrot.lane.b32.xlu0 %v536, 112
      %v784 = vpop.permute.xlu0 %783
      %785 = vrot.lane.b32.xlu0 %v537, 112
      %v786 = vpop.permute.xlu0 %785
      %vm787 = vcmp.lt.s32.totalorder %v547, 112
      %v788 = vsel %vm787, %v784, %v786
      %v789 = vsel %vm787, %v782, %v784
      %v790 = vsel %vm787, %v780, %v782
      %v791 = vsel %vm787, %v786, %v780
      %s792 = scalar_lea.vmem %s1, 7
      %v793 = vld [vmem:[%s792] ss:$8 sm:$0xf]
      %v795 = vlaneseq
      %v796 = vshrl.u32 %v795, 7
      %v797 = vsub.s32 0, %v796
      %v798 = vrot.slane %v793, %v797
      %v799 = vlaneseq
      %v800 = vshrl.u32 %v799, 7
      %v801 = vsub.s32 1, %v800
      %v802 = vrot.slane %v793, %v801
      %v803 = vlaneseq
      %v804 = vshrl.u32 %v803, 7
      %v805 = vsub.s32 2, %v804
      %v806 = vrot.slane %v793, %v805
      %v807 = vlaneseq
      %v808 = vshrl.u32 %v807, 7
      %v809 = vsub.s32 3, %v808
      %v810 = vrot.slane %v793, %v809
      %v815 = vmul.f32 %v790, %v798
      %v816 = vmul.f32 %v789, %v802
      %v817 = vmul.f32 %v788, %v806
      %v818 = vmul.f32 %v791, %v810
      %819 = vrot.lane.b32.xlu0 %v534, 111
      %v820 = vpop.permute.xlu0 %819
      %821 = vrot.lane.b32.xlu0 %v535, 111
      %v822 = vpop.permute.xlu0 %821
      %823 = vrot.lane.b32.xlu0 %v536, 111
      %v824 = vpop.permute.xlu0 %823
      %825 = vrot.lane.b32.xlu0 %v537, 111
      %v826 = vpop.permute.xlu0 %825
      %vm827 = vcmp.lt.s32.totalorder %v547, 111
      %v828 = vsel %vm827, %v824, %v826
      %v829 = vsel %vm827, %v822, %v824
      %v830 = vsel %vm827, %v820, %v822
      %v831 = vsel %vm827, %v826, %v820
      %s832 = scalar_lea.vmem %s1, 32
      %v833 = vld [vmem:[%s832] ss:$8 sm:$0xf]
      %v835 = vlaneseq
      %v836 = vshrl.u32 %v835, 7
      %v837 = vsub.s32 0, %v836
      %v838 = vrot.slane %v833, %v837
      %v839 = vlaneseq
      %v840 = vshrl.u32 %v839, 7
      %v841 = vsub.s32 1, %v840
      %v842 = vrot.slane %v833, %v841
      %v843 = vlaneseq
      %v844 = vshrl.u32 %v843, 7
      %v845 = vsub.s32 2, %v844
      %v846 = vrot.slane %v833, %v845
      %v847 = vlaneseq
      %v848 = vshrl.u32 %v847, 7
      %v849 = vsub.s32 3, %v848
      %v850 = vrot.slane %v833, %v849
      %v855 = vmul.f32 %v830, %v838
      %v856 = vmul.f32 %v829, %v842
      %v857 = vmul.f32 %v828, %v846
      %v858 = vmul.f32 %v831, %v850
      %v859 = vpack.c.bf16 %v615, %v575
      %v860 = vpack.c.bf16 %v616, %v576
      %v861 = vpack.c.bf16 %v617, %v577
      %v862 = vpack.c.bf16 %v618, %v578
      %v863 = vpack.c.bf16 %v695, %v655
      %v864 = vpack.c.bf16 %v696, %v656
      %v865 = vpack.c.bf16 %v697, %v657
      %v866 = vpack.c.bf16 %v698, %v658
      %v867 = vpack.c.bf16 %v735, %v534
      %v868 = vpack.c.bf16 %v736, %v535
      %v869 = vpack.c.bf16 %v737, %v536
      %v870 = vpack.c.bf16 %v738, %v537
      %v871 = vpack.c.bf16 %v815, %v775
      %v872 = vpack.c.bf16 %v816, %v776
      %v873 = vpack.c.bf16 %v817, %v777
      %v874 = vpack.c.bf16 %v818, %v778
      %v875 = vpack.c.bf16 %v855, %v855
      %v876 = vpack.c.bf16 %v856, %v856
      %v877 = vpack.c.bf16 %v857, %v857
      %v878 = vpack.c.bf16 %v858, %v858
      %v879 = vld [vmem:[%s364] sm:$0xf]
      %v880 = vpack.c.bf16 %v879, %v879
      %vm881 = vcmask 588800
      %v883 = vsel %vm881, %v880, 0
      %vm885 = vcmask 1043456
      %v887 = vsel %vm885, %v875, 0
      %v890 = vsel %vm885, %v876, 0
      %v893 = vsel %vm885, %v877, 0
      %v896 = vsel %vm885, %v878, 0
      %898 = vmatprep.subr.bf16.mxu0 %v860
      %899 = vmatpush1.bf16.msra.mxu0 %v859
      %900 = vmatprep.subr.bf16.mxu0 %v864
      %901 = vmatpush1.bf16.msra.mxu0 %v863
      %902 = vmatprep.subr.bf16.mxu0 %v868
      %903 = vmatpush1.bf16.msra.mxu0 %v867
      %904 = vmatprep.subr.bf16.mxu0 %v872
      %905 = vmatpush1.bf16.msra.mxu0 %v871
      %906 = vmatprep.subr.bf16.mxu0 %v890
      %907 = vmatpush1.bf16.msra.mxu0 %v887
      %908 = vmatprep.subr.bf16.mxu0 0
      %909 = vmatpush1.bf16.msra.mxu0 0
      %910 = vmatprep.subr.bf16.mxu0 0
      %911 = vmatpush1.bf16.msra.mxu0 0
      %912 = vmatprep.subr.bf16.mxu0 0
      %913 = vmatpush1.bf16.msra.mxu0 0
      %914 = vmatprep.subr.bf16.mxu0 0
      %915 = vmatpush1.bf16.msra.mxu0 0
      %916 = vmatprep.subr.bf16.mxu0 0
      %917 = vmatpush1.bf16.msra.mxu0 0
      %918 = vmatprep.subr.bf16.mxu0 0
      %919 = vmatpush1.bf16.msra.mxu0 0
      %920 = vmatprep.subr.bf16.mxu0 0
      %921 = vmatpush1.bf16.msra.mxu0 0
      %922 = vmatprep.subr.bf16.mxu0 0
      %923 = vmatpush1.bf16.msra.mxu0 0
      %924 = vmatprep.subr.bf16.mxu0 0
      %925 = vmatpush1.bf16.msra.mxu0 0
      %926 = vmatprep.subr.bf16.mxu0 0
      %927 = vmatpush1.bf16.msra.mxu0 0
      %928 = vmatprep.subr.bf16.mxu0 0
      %929 = vmatpush1.bf16.msra.mxu0 0
      %930 = vmatprep.mubr.bf16.mxu0 0
      %931 = vmatmul.mubr.bf16.gmra.mrb[0].mxu0 %v883
      %v932 = vpop.f32.mrb[0].mxu0
      %v933 = vadd.f32 0.0, %v932
      %v934 = vpop.f32.mrb[0].mxu0
      %v935 = vadd.f32 0.0, %v934
      %v936 = vpop.f32.mrb[0].mxu0
      %v937 = vpop.f32.mrb[0].mxu0
      %938 = vdwg.mxu0
      %939 = vmatprep.subr.bf16.mxu0 %v862
      %940 = vmatpush1.bf16.msra.mxu0 %v861
      %941 = vmatprep.subr.bf16.mxu0 %v866
      %942 = vmatpush1.bf16.msra.mxu0 %v865
      %943 = vmatprep.subr.bf16.mxu0 %v870
      %944 = vmatpush1.bf16.msra.mxu0 %v869
      %945 = vmatprep.subr.bf16.mxu0 %v874
      %946 = vmatpush1.bf16.msra.mxu0 %v873
      %947 = vmatprep.subr.bf16.mxu0 %v896
      %948 = vmatpush1.bf16.msra.mxu0 %v893
      %949 = vmatprep.subr.bf16.mxu0 0
      %950 = vmatpush1.bf16.msra.mxu0 0
      %951 = vmatprep.subr.bf16.mxu0 0
      %952 = vmatpush1.bf16.msra.mxu0 0
      %953 = vmatprep.subr.bf16.mxu0 0
      %954 = vmatpush1.bf16.msra.mxu0 0
      %955 = vmatprep.subr.bf16.mxu0 0
      %956 = vmatpush1.bf16.msra.mxu0 0
      %957 = vmatprep.subr.bf16.mxu0 0
      %958 = vmatpush1.bf16.msra.mxu0 0
      %959 = vmatprep.subr.bf16.mxu0 0
      %960 = vmatpush1.bf16.msra.mxu0 0
      %961 = vmatprep.subr.bf16.mxu0 0
      %962 = vmatpush1.bf16.msra.mxu0 0
      %963 = vmatprep.subr.bf16.mxu0 0
      %964 = vmatpush1.bf16.msra.mxu0 0
      %965 = vmatprep.subr.bf16.mxu0 0
      %966 = vmatpush1.bf16.msra.mxu0 0
      %967 = vmatprep.subr.bf16.mxu0 0
      %968 = vmatpush1.bf16.msra.mxu0 0
      %969 = vmatprep.subr.bf16.mxu0 0
      %970 = vmatpush1.bf16.msra.mxu0 0
      %971 = vmatprep.mubr.bf16.mxu0 0
      %972 = vmatmul.mubr.bf16.gmra.mrb[0].mxu0 %v883
      %v973 = vpop.f32.mrb[0].mxu0
      %v974 = vadd.f32 0.0, %v973
      %v975 = vpop.f32.mrb[0].mxu0
      %v976 = vadd.f32 0.0, %v975
      %v977 = vpop.f32.mrb[0].mxu0
      %v978 = vpop.f32.mrb[0].mxu0
      %979 = vdwg.mxu0
      %v980 = vsel %vm885, %v933, 0.0
      %v981 = vsel %vm885, %v935, 0.0
      %v982 = vadd.f32 %v980, %v981
      %v983 = vsel %vm885, %v974, 0.0
      %v984 = vadd.f32 %v982, %v983
      %v985 = vsel %vm885, %v976, 0.0
      %v986 = vadd.f32 %v984, %v985
      %987 = vadd.xlane.f32.xlu0 %v986
      %v988 = vpop.xlane.xlu0 %987
      %v989 = vmul.f32 %v933, %v933
      %v990 = vmul.f32 %v935, %v935
      %v991 = vmul.f32 %v974, %v974
      %v992 = vmul.f32 %v976, %v976
      %v993 = vsel %vm885, %v989, 0.0
      %v994 = vsel %vm885, %v990, 0.0
      %v995 = vadd.f32 %v993, %v994
      %v996 = vsel %vm885, %v991, 0.0
      %v997 = vadd.f32 %v995, %v996
      %v998 = vsel %vm885, %v992, 0.0
      %v999 = vadd.f32 %v997, %v998
      %1000 = vadd.xlane.f32.xlu0 %v999
      %v1001 = vpop.xlane.xlu0 %1000
      %v1002 = vmul.f32 %v988, 0.001953125
      %v1003 = vmul.f32 %v1001, 0.001953125
      %v1004 = vmul.f32 %v1002, %v1002
      %v1005 = vsub.f32 %v1003, %v1004
      %v1006 = vld [vmem:[%s368] sm:$0xf]
      %v1007 = vadd.f32 %v1005, 1e-05
      %v1008 = vrsqrt.pop %v1007
      %v1009 = vmul.f32 %v1006, %v1008
      %1011 = vset.pattern.permute.xlu0 0
      %1012 = vperm.xlu0 %1011, %v1009
      %v1013 = vpop.permute.xlu0 %1012
      %v1015 = vmul.f32 %v933, %v1013
      %v1016 = vmul.f32 %v935, %v1013
      %v1017 = vmul.f32 %v974, %v1013
      %v1018 = vmul.f32 %v976, %v1013
      %v1019 = vld [vmem:[%s372] sm:$0xf]
      %v1020 = vmul.f32 %v1002, %v1009
      %v1021 = vsub.f32 %v1019, %v1020
      %1023 = vset.pattern.permute.xlu0 0
      %1024 = vperm.xlu0 %1023, %v1021
      %v1025 = vpop.permute.xlu0 %1024
      %v1027 = vadd.f32 %v1015, %v1025
      %v1028 = vadd.f32 %v1016, %v1025
      %v1029 = vadd.f32 %v1017, %v1025
      %v1030 = vadd.f32 %v1018, %v1025
      %v1031 = vmul.f32 %v1027, 0.01
      %v1032 = vmul.f32 %v1028, 0.01
      %v1033 = vmul.f32 %v1029, 0.01
      %v1034 = vmul.f32 %v1030, 0.01
      %v1035 = vmax.f32 %v1027, %v1031
      %v1036 = vmax.f32 %v1028, %v1032
      %v1037 = vmax.f32 %v1029, %v1033
      %v1038 = vmax.f32 %v1030, %v1034
      %v1039 = vmul.f32 %v382, 0.01
      %v1040 = vmul.f32 %v383, 0.01
      %v1041 = vmax.f32 %v382, %v1039
      %v1042 = vmax.f32 %v383, %v1040
      %v1045 = vcombine.high %v1041, %v1041
      %v1046 = vcombine.high %v1042, %v1042
      %v1049 = vadd.f32 %v1035, %v1041
      %v1050 = vadd.f32 %v1036, %v1045
      %v1051 = vadd.f32 %v1037, %v1042
      %v1052 = vadd.f32 %v1038, %v1046
      %v1057 = vcombine.low %v1049, %v1050
      %v1058 = vcombine.low %v1051, %v1052
      %1061 = vst [vmem:[%s8] sm:$0xff] %v1057
      %1062 = vst [vmem:[%s8 + $0x8] sm:$0xff] %v1058
      // Predicated region
      $region57: #{residual_block_series.1} parent=51 // pred_check
        %p1063 = pneg %p230
      $region58: #{residual_block_series.1} parent=51 // pred_check_branch
        %1065 = sbr.rel (%p1063) target = $region60
      $region59: #{residual_block_series.1} parent=51 // pred_region
        _
      $region60: #{residual_block_series.1} parent=51 // pred_fallthru
        _
      // Predicated region
      $region61: #{residual_block_series.1} parent=51 // pred_check
        %p1066 = pneg %p230
      $region62: #{residual_block_series.1} parent=51 // pred_check_branch
        %1068 = sbr.rel (%p1066) target = $region64
      $region63: #{residual_block_series.1} parent=51 // pred_region
        _
      $region64: #{residual_block_series.1} parent=51 // pred_fallthru
        _
    $region52: #{residual_block_series.1} parent=5 // pred_fallthru
      _
    %p1069 = scmp.le.s32.totalorder 2, %s14
    // Predicated region
    $region65: #{residual_block_series.1} parent=5 // pred_check
      %p1070 = pneg %p1069
    $region66: #{residual_block_series.1} parent=5 // pred_check_branch
      %1072 = sbr.rel (%p1070) target = $region68
    $region67: #{residual_block_series.1} parent=5 // pred_region
      %s1073 = ssub.s32 %s14, 2
    $region68: #{residual_block_series.1} parent=5 // pred_fallthru
      _
  $region6: #{residual_block_series.1} parent=0 // loop_footer
    %s18 = sadd.s32 1, %s14
  $region7: #{residual_block_series.1} parent=0 // loop_footer_branch
    %13 = sbr.rel target = $region3
  $region8: #{residual_block_series.1} parent=0 // loop_exit
    _

</llo_original>
